<compile_context>
chip_gen: v7x
topology: tpu7x:2x2x1
jax: 0.10.0
libtpu: 0.0.40
codegen_flags: <defaults>
</compile_context>

<pallas_src>
import functools

import jax
import jax.numpy as jnp
from jax.experimental import pallas as pl
from jax.experimental.pallas import tpu as pltpu

P = 128          # padded feature width for hidden layers / output (lane-dense)
N_LAYERS = 5
HIDDEN_DIMS = [32, 64, 128, 64]   # fc1..fc4 output widths; fc7 -> action_space


def _round_up(n, m):
    return ((n + m - 1) // m) * m


def _qnet_kernel(x_ref, w_ref, b_ref, o_ref, *, obs_pad):
    # x_ref: (B_TILE, obs_pad) bf16
    # w_ref: (5, P, P) bf16 (VMEM-resident), b_ref: (5, 1, P) f32
    # o_ref: (B_TILE, P) bf16
    h = x_ref[...]                                        # bf16 activations
    for layer in range(N_LAYERS):
        if layer == 0:
            # Static, sublane-aligned slice: only the first obs_pad weight rows
            # participate (remaining rows are exact zeros anyway).
            w = w_ref[0, :obs_pad, :]                     # (obs_pad, P) bf16
        else:
            w = w_ref[layer]                              # (P, P) bf16
        acc = jnp.dot(h, w, preferred_element_type=jnp.float32) + b_ref[layer]
        if layer < N_LAYERS - 1:
            acc = jnp.maximum(acc, 0.0)                   # ReLU in f32
        h = acc.astype(jnp.bfloat16)                      # bf16 between layers
    o_ref[...] = h.astype(o_ref.dtype)


@functools.partial(jax.jit, static_argnames=("action_space", "b_tile"))
def qnetwork_forward(x, w_packed, b_packed, *, action_space, b_tile=1024):
    batch, obs = x.shape
    obs_pad = _round_up(obs, 8)

    # Guarantee >= 2 grid steps whenever batch allows (v7x: 2 TensorCores share
    # a "parallel" grid axis), and snap the tile to a power of two so small
    # batches reuse a few canonical block shapes.
    target = _round_up(pl.cdiv(batch, 2), 8)
    b_tile = max(8, min(b_tile, pl.next_power_of_2(target)))
    batch_pad = _round_up(batch, b_tile)

    # Minimal zero-pad (batch -> batch_pad, obs -> obs_pad) in bf16.  Padded
    # rows are sliced off below; padded obs lanes hit zero weight rows, so the
    # padding is numerically exact.
    if batch_pad == batch and obs_pad == obs:
        x_in = x.astype(jnp.bfloat16)
    else:
        x_in = jnp.zeros((batch_pad, obs_pad), jnp.bfloat16)
        x_in = x_in.at[:batch, :obs].set(x.astype(jnp.bfloat16))

    grid = (batch_pad // b_tile,)

    flops = 2 * N_LAYERS * batch_pad * P * P
    bytes_accessed = (batch_pad * obs_pad * 2      # activations in (bf16)
                      + N_LAYERS * P * P * 2       # packed weights (bf16)
                      + N_LAYERS * P * 4           # packed biases (f32)
                      + batch_pad * P * 2)         # output (bf16)

    out = pl.pallas_call(
        functools.partial(_qnet_kernel, obs_pad=obs_pad),
        out_shape=jax.ShapeDtypeStruct((batch_pad, P), jnp.bfloat16),
        grid=grid,
        in_specs=[
            # activations: tiled over batch, last dim == full array dim (legal)
            pl.BlockSpec((b_tile, obs_pad), lambda i: (i, 0)),
            # packed weights / biases: constant index_map -> VMEM-resident
            pl.BlockSpec((N_LAYERS, P, P), lambda i: (0, 0, 0)),
            pl.BlockSpec((N_LAYERS, 1, P), lambda i: (0, 0, 0)),
        ],
        out_specs=pl.BlockSpec((b_tile, P), lambda i: (i, 0)),
        compiler_params=pltpu.CompilerParams(
            dimension_semantics=("parallel",)),
        cost_estimate=pl.CostEstimate(
            flops=flops, transcendentals=0, bytes_accessed=bytes_accessed),
    )(x_in, w_packed, b_packed)

    return out[:batch, :action_space].astype(jnp.float32)


def init_qnetwork_params(key, observation_space, action_space):
    """Deterministic init mimicking PyTorch Linear default (uniform +-1/sqrt(fan_in)).

    Weights are packed, pre-transposed to (in, out), zero-padded to 128x128 and
    stored in bf16.  Biases are packed into a (5, 1, 128) f32 slab.  Padded
    entries are exactly zero so the lane padding is numerically exact."""
    dims = [observation_space] + HIDDEN_DIMS + [action_space]
    w_packed = jnp.zeros((N_LAYERS, P, P), jnp.bfloat16)
    b_packed = jnp.zeros((N_LAYERS, 1, P), jnp.float32)
    for i in range(N_LAYERS):
        fan_in, fan_out = dims[i], dims[i + 1]
        key, kw, kb = jax.random.split(key, 3)
        bound = 1.0 / (float(fan_in) ** 0.5)
        w = jax.random.uniform(kw, (fan_in, fan_out), jnp.float32, -bound, bound)
        b = jax.random.uniform(kb, (fan_out,), jnp.float32, -bound, bound)
        w_packed = w_packed.at[i, :fan_in, :fan_out].set(w.astype(jnp.bfloat16))
        b_packed = b_packed.at[i, 0, :fan_out].set(b)
    return w_packed, b_packed


def qnetwork_reference_exact(x, w_packed, b_packed, observation_space, action_space):
    """Plain-JAX reference mirroring the kernel arithmetic exactly
    (bf16 activations/operands, f32 accumulate + bias + ReLU, bf16 output)."""
    dims = [observation_space] + HIDDEN_DIMS + [action_space]
    h = x.astype(jnp.bfloat16)
    for i in range(N_LAYERS):
        w = w_packed[i, :dims[i], :dims[i + 1]]
        b = b_packed[i, 0, :dims[i + 1]]
        acc = jnp.dot(h, w, preferred_element_type=jnp.float32) + b
        if i < N_LAYERS - 1:
            acc = jnp.maximum(acc, 0.0)
        h = acc.astype(jnp.bfloat16)
    return h.astype(jnp.float32)


def qnetwork_reference_f32(x, w_packed, b_packed, observation_space, action_space):
    """Full-f32 reference matching the original PyTorch forward (loose check only)."""
    dims = [observation_space] + HIDDEN_DIMS + [action_space]
    h = x.astype(jnp.float32)
    for i in range(N_LAYERS):
        w = w_packed[i, :dims[i], :dims[i + 1]].astype(jnp.float32)
        b = b_packed[i, 0, :dims[i + 1]]
        h = h @ w + b
        if i < N_LAYERS - 1:
            h = jnp.maximum(h, 0.0)
    return h


if __name__ == "__main__":
    key = jax.random.PRNGKey(0)

    observation_space = 4   # e.g. CartPole observation dim
    action_space = 2        # e.g. CartPole action dim
    batch = 2

    key, kx = jax.random.split(key)
    x = jax.random.normal(kx, (batch, observation_space), jnp.float32)

    w_packed, b_packed = init_qnetwork_params(key, observation_space, action_space)

    out = qnetwork_forward(x, w_packed, b_packed, action_space=action_space)
    out = jax.block_until_ready(out)
    assert out.shape == (batch, action_space)

    # Exact-arithmetic check (same bf16 activations / f32-accumulate math).
    ref = qnetwork_reference_exact(x, w_packed, b_packed, observation_space, action_space)
    assert jnp.allclose(out, ref, atol=1e-4, rtol=1e-4), (out, ref)

    # Loose sanity check against the pure-f32 PyTorch-equivalent forward
    # (bf16 weights/activations introduce small quantization error).
    ref_f32 = qnetwork_reference_f32(x, w_packed, b_packed, observation_space, action_space)
    assert jnp.allclose(out, ref_f32, atol=1e-1, rtol=1e-1), (out, ref_f32)

    print("KERNEL_OK")
</pallas_src>

<mosaic_0001>
module attributes {stable_mosaic.version = 11 : i64} {
  func.func @_qnet_kernel(%arg0: i32, %arg1: memref<8x8xbf16, #tpu.memory_space<vmem>>, %arg2: memref<5x128x128xbf16, #tpu.memory_space<vmem>>, %arg3: memref<5x1x128xf32, #tpu.memory_space<vmem>>, %arg4: memref<8x128xbf16, #tpu.memory_space<vmem>>) attributes {dimension_semantics = [#tpu.dimension_semantics<parallel>], iteration_bounds = array<i64: 1>, scalar_prefetch = 0 : i64, scratch_operands = 0 : i64, tpu.core_type = #tpu.core_type<tc>, window_params = [{transform_indices = @transform_0, window_bounds = array<i64: 8, 8>}, {pipeline_mode = #tpu.pipeline_mode<synchronous>, transform_indices = @transform_1, window_bounds = array<i64: 5, 128, 128>}, {pipeline_mode = #tpu.pipeline_mode<synchronous>, transform_indices = @transform_2, window_bounds = array<i64: 5, 1, 128>}, {transform_indices = @transform_3, window_bounds = array<i64: 8, 128>}]} {
    %c0 = arith.constant 0 : index
    %c0_0 = arith.constant 0 : index
    %0 = vector.load %arg1[%c0, %c0_0] : memref<8x8xbf16, #tpu.memory_space<vmem>>, vector<8x8xbf16>
    %c0_1 = arith.constant 0 : index
    %c0_2 = arith.constant 0 : index
    %c0_3 = arith.constant 0 : index
    %1 = vector.load %arg2[%c0_1, %c0_2, %c0_3] : memref<5x128x128xbf16, #tpu.memory_space<vmem>>, vector<1x8x128xbf16>
    %2 = vector.shape_cast %1 : vector<1x8x128xbf16> to vector<8x128xbf16>
    %cst = arith.constant dense<0.000000e+00> : vector<8x128xf32>
    %3 = tpu.matmul %0, %2, %cst {dimension_numbers = #tpu.dot_dimension_numbers<[1], [0], [0], [1], [0, 0, 1, 1], [], []>} : vector<8x8xbf16>, vector<8x128xbf16>, vector<8x128xf32> -> vector<8x128xf32>
    %c0_4 = arith.constant 0 : index
    %c0_5 = arith.constant 0 : index
    %c0_6 = arith.constant 0 : index
    %4 = vector.load %arg3[%c0_4, %c0_5, %c0_6] : memref<5x1x128xf32, #tpu.memory_space<vmem>>, vector<1x1x128xf32>
    %5 = vector.shape_cast %4 : vector<1x1x128xf32> to vector<1x128xf32>
    %6 = vector.broadcast %5 : vector<1x128xf32> to vector<8x128xf32>
    %7 = arith.addf %3, %6 : vector<8x128xf32>
    %cst_7 = arith.constant 0.000000e+00 : f32
    %8 = vector.broadcast %cst_7 : f32 to vector<8x128xf32>
    %9 = arith.maximumf %7, %8 : vector<8x128xf32>
    %10 = arith.truncf %9 : vector<8x128xf32> to vector<8x128xbf16>
    %c1 = arith.constant 1 : index
    %c0_8 = arith.constant 0 : index
    %c0_9 = arith.constant 0 : index
    %11 = vector.load %arg2[%c1, %c0_8, %c0_9] : memref<5x128x128xbf16, #tpu.memory_space<vmem>>, vector<1x128x128xbf16>
    %12 = vector.shape_cast %11 : vector<1x128x128xbf16> to vector<128x128xbf16>
    %cst_10 = arith.constant dense<0.000000e+00> : vector<8x128xf32>
    %13 = tpu.matmul %10, %12, %cst_10 {dimension_numbers = #tpu.dot_dimension_numbers<[1], [0], [0], [1], [0, 0, 1, 1], [], []>} : vector<8x128xbf16>, vector<128x128xbf16>, vector<8x128xf32> -> vector<8x128xf32>
    %c1_11 = arith.constant 1 : index
    %c0_12 = arith.constant 0 : index
    %c0_13 = arith.constant 0 : index
    %14 = vector.load %arg3[%c1_11, %c0_12, %c0_13] : memref<5x1x128xf32, #tpu.memory_space<vmem>>, vector<1x1x128xf32>
    %15 = vector.shape_cast %14 : vector<1x1x128xf32> to vector<1x128xf32>
    %16 = vector.broadcast %15 : vector<1x128xf32> to vector<8x128xf32>
    %17 = arith.addf %13, %16 : vector<8x128xf32>
    %cst_14 = arith.constant 0.000000e+00 : f32
    %18 = vector.broadcast %cst_14 : f32 to vector<8x128xf32>
    %19 = arith.maximumf %17, %18 : vector<8x128xf32>
    %20 = arith.truncf %19 : vector<8x128xf32> to vector<8x128xbf16>
    %c2 = arith.constant 2 : index
    %c0_15 = arith.constant 0 : index
    %c0_16 = arith.constant 0 : index
    %21 = vector.load %arg2[%c2, %c0_15, %c0_16] : memref<5x128x128xbf16, #tpu.memory_space<vmem>>, vector<1x128x128xbf16>
    %22 = vector.shape_cast %21 : vector<1x128x128xbf16> to vector<128x128xbf16>
    %cst_17 = arith.constant dense<0.000000e+00> : vector<8x128xf32>
    %23 = tpu.matmul %20, %22, %cst_17 {dimension_numbers = #tpu.dot_dimension_numbers<[1], [0], [0], [1], [0, 0, 1, 1], [], []>} : vector<8x128xbf16>, vector<128x128xbf16>, vector<8x128xf32> -> vector<8x128xf32>
    %c2_18 = arith.constant 2 : index
    %c0_19 = arith.constant 0 : index
    %c0_20 = arith.constant 0 : index
    %24 = vector.load %arg3[%c2_18, %c0_19, %c0_20] : memref<5x1x128xf32, #tpu.memory_space<vmem>>, vector<1x1x128xf32>
    %25 = vector.shape_cast %24 : vector<1x1x128xf32> to vector<1x128xf32>
    %26 = vector.broadcast %25 : vector<1x128xf32> to vector<8x128xf32>
    %27 = arith.addf %23, %26 : vector<8x128xf32>
    %cst_21 = arith.constant 0.000000e+00 : f32
    %28 = vector.broadcast %cst_21 : f32 to vector<8x128xf32>
    %29 = arith.maximumf %27, %28 : vector<8x128xf32>
    %30 = arith.truncf %29 : vector<8x128xf32> to vector<8x128xbf16>
    %c3 = arith.constant 3 : index
    %c0_22 = arith.constant 0 : index
    %c0_23 = arith.constant 0 : index
    %31 = vector.load %arg2[%c3, %c0_22, %c0_23] : memref<5x128x128xbf16, #tpu.memory_space<vmem>>, vector<1x128x128xbf16>
    %32 = vector.shape_cast %31 : vector<1x128x128xbf16> to vector<128x128xbf16>
    %cst_24 = arith.constant dense<0.000000e+00> : vector<8x128xf32>
    %33 = tpu.matmul %30, %32, %cst_24 {dimension_numbers = #tpu.dot_dimension_numbers<[1], [0], [0], [1], [0, 0, 1, 1], [], []>} : vector<8x128xbf16>, vector<128x128xbf16>, vector<8x128xf32> -> vector<8x128xf32>
    %c3_25 = arith.constant 3 : index
    %c0_26 = arith.constant 0 : index
    %c0_27 = arith.constant 0 : index
    %34 = vector.load %arg3[%c3_25, %c0_26, %c0_27] : memref<5x1x128xf32, #tpu.memory_space<vmem>>, vector<1x1x128xf32>
    %35 = vector.shape_cast %34 : vector<1x1x128xf32> to vector<1x128xf32>
    %36 = vector.broadcast %35 : vector<1x128xf32> to vector<8x128xf32>
    %37 = arith.addf %33, %36 : vector<8x128xf32>
    %cst_28 = arith.constant 0.000000e+00 : f32
    %38 = vector.broadcast %cst_28 : f32 to vector<8x128xf32>
    %39 = arith.maximumf %37, %38 : vector<8x128xf32>
    %40 = arith.truncf %39 : vector<8x128xf32> to vector<8x128xbf16>
    %c4 = arith.constant 4 : index
    %c0_29 = arith.constant 0 : index
    %c0_30 = arith.constant 0 : index
    %41 = vector.load %arg2[%c4, %c0_29, %c0_30] : memref<5x128x128xbf16, #tpu.memory_space<vmem>>, vector<1x128x128xbf16>
    %42 = vector.shape_cast %41 : vector<1x128x128xbf16> to vector<128x128xbf16>
    %cst_31 = arith.constant dense<0.000000e+00> : vector<8x128xf32>
    %43 = tpu.matmul %40, %42, %cst_31 {dimension_numbers = #tpu.dot_dimension_numbers<[1], [0], [0], [1], [0, 0, 1, 1], [], []>} : vector<8x128xbf16>, vector<128x128xbf16>, vector<8x128xf32> -> vector<8x128xf32>
    %c4_32 = arith.constant 4 : index
    %c0_33 = arith.constant 0 : index
    %c0_34 = arith.constant 0 : index
    %44 = vector.load %arg3[%c4_32, %c0_33, %c0_34] : memref<5x1x128xf32, #tpu.memory_space<vmem>>, vector<1x1x128xf32>
    %45 = vector.shape_cast %44 : vector<1x1x128xf32> to vector<1x128xf32>
    %46 = vector.broadcast %45 : vector<1x128xf32> to vector<8x128xf32>
    %47 = arith.addf %43, %46 : vector<8x128xf32>
    %48 = arith.truncf %47 : vector<8x128xf32> to vector<8x128xbf16>
    %c0_35 = arith.constant 0 : index
    %c0_36 = arith.constant 0 : index
    %49 = vector.load %arg4[%c0_35, %c0_36] : memref<8x128xbf16, #tpu.memory_space<vmem>>, vector<8x128xbf16>
    tpu.vector_store %arg4[%c0_35, %c0_36], %48 {strides = array<i32>} : memref<8x128xbf16, #tpu.memory_space<vmem>>, vector<8x128xbf16>,
    return
  }
  func.func @transform_0(%arg0: i32) -> (i32, i32) {
    %c0_i32 = arith.constant 0 : i32
    %c0_i32_0 = arith.constant 0 : i32
    return %arg0, %c0_i32 : i32, i32
  }
  func.func @transform_1(%arg0: i32) -> (i32, i32, i32) {
    %c0_i32 = arith.constant 0 : i32
    %c0_i32_0 = arith.constant 0 : i32
    %c0_i32_1 = arith.constant 0 : i32
    %c0_i32_2 = arith.constant 0 : i32
    return %c0_i32, %c0_i32_0, %c0_i32_1 : i32, i32, i32
  }
  func.func @transform_2(%arg0: i32) -> (i32, i32, i32) {
    %c0_i32 = arith.constant 0 : i32
    %c0_i32_0 = arith.constant 0 : i32
    %c0_i32_1 = arith.constant 0 : i32
    %c0_i32_2 = arith.constant 0 : i32
    return %c0_i32, %c0_i32_0, %c0_i32_1 : i32, i32, i32
  }
  func.func @transform_3(%arg0: i32) -> (i32, i32) {
    %c0_i32 = arith.constant 0 : i32
    %c0_i32_0 = arith.constant 0 : i32
    return %arg0, %c0_i32 : i32, i32
  }
}

</mosaic_0001>

<llo_original>
// kernel: qnetwork_forward.1
$region0: #{qnetwork_forward.1}
  #allocation0 [shape = 'u32[]', space=smem, size = 0x4, offset = 0x4, fixed_abs, tag = 'smem constant byte address 0x4 - core index']
  #allocation1 [shape = 'u32[144,128]{1,0:T(1,128)}', space=vmem, size = 0x12000, scoped, tag = 'internal scratch']
  %s0 = inlined_call_operand.vmem [shape: bf16[8,8], index: 0, kind: input, shape index: {}]
  %s1 = inlined_call_operand.hbm [shape: bf16[5,128,128], index: 1, kind: input, shape index: {}]
  %s2 = inlined_call_operand.vmem [shape: f32[5,1,128], index: 2, kind: input, shape index: {}]
  %s3 = inlined_call_operand.vmem [shape: bf16[8,128], index: 3, kind: output, shape index: {}]
  %s4 = sld [smem:[#allocation0]]
  $region26: #{qnetwork_forward.1} parent=0
    _
  %s6 = ssub.s32 1, %s4
  %s7 = scalar_select 0, %s6, %s4
  $region1: #{qnetwork_forward.1} parent=0
    #allocation2 [shape = 'u8[163840]{0}', space=vmem, size = 0x28000, scoped, tag = 'input window, operand 1, single buffered']
    #allocation3 [shape = 's32[1]{0}', space=sflag, size = 0x4, scoped, tag = 'scoped memory for qnetwork_forward.1']
    %8 = vsyncpa [#allocation3], 0
    // Predicated region
    $region2: #{qnetwork_forward.1} parent=1 // pred_check
      _
    $region3: #{qnetwork_forward.1} parent=1 // pred_check_branch
      %10 = sbr.rel (0) target = $region5
    $region4: #{qnetwork_forward.1} parent=1 // pred_region
      _
    $region5: #{qnetwork_forward.1} parent=1 // pred_fallthru
      _
    // Predicated region
    $region6: #{qnetwork_forward.1} parent=1 // pred_check
      _
    $region7: #{qnetwork_forward.1} parent=1 // pred_check_branch
      %12 = sbr.rel (0) target = $region9
    $region8: #{qnetwork_forward.1} parent=1 // pred_region
      %s14 = ssub.s32 5120, 5120
      %15 = vsyncadd [#allocation3], %s14
      %s16 = sshll.u32 [#allocation2], 4
      %s17 = int_to_ptr.vmem [resolvable:$true] %s16
      %22 = dma.hbm_to_vmem [thread:$0]  %s1, 5120, %s17, [#allocation3], 64, 64, 4
    $region9: #{qnetwork_forward.1} parent=1 // pred_fallthru
      _
    // Predicated region
    $region10: #{qnetwork_forward.1} parent=1 // pred_check
      _
    $region11: #{qnetwork_forward.1} parent=1 // pred_check_branch
      %24 = sbr.rel (0) target = $region13
    $region12: #{qnetwork_forward.1} parent=1 // pred_region
      _
    $region13: #{qnetwork_forward.1} parent=1 // pred_fallthru
      _
    // Predicated region
    $region14: #{qnetwork_forward.1} parent=1 // pred_check
      _
    $region15: #{qnetwork_forward.1} parent=1 // pred_check_branch
      %26 = sbr.rel (0) target = $region17
    $region16: #{qnetwork_forward.1} parent=1 // pred_region
      %27 = dma.done [#allocation3], 5120
    $region17: #{qnetwork_forward.1} parent=1 // pred_fallthru
      _
    %v29 = vld [vmem:[%s0] sm:$0xf]
    %v30 = vld [vmem:[#allocation2] sm:$0xf]
    %v31 = vld [vmem:[%s2] sm:$0x1]
    %v33 = vlaneseq
    %v34 = vshrl.u32 %v33, 7
    %v35 = vsub.s32 0, %v34
    %v36 = vrot.slane %v31, %v35
    %vm38 = vcmask 64512
    %v40 = vsel %vm38, %v29, 0
    %vm42 = vcmask 1043456
    %v44 = vsel %vm42, %v30, 0
    %46 = vmatprep.subr.bf16.mxu0 0
    %47 = vmatpush1.bf16.msra.mxu0 %v44
    %48 = vmatprep.subr.bf16.mxu0 0
    %49 = vmatpush1.bf16.msra.mxu0 0
    %50 = vmatprep.subr.bf16.mxu0 0
    %51 = vmatpush1.bf16.msra.mxu0 0
    %52 = vmatprep.subr.bf16.mxu0 0
    %53 = vmatpush1.bf16.msra.mxu0 0
    %54 = vmatprep.subr.bf16.mxu0 0
    %55 = vmatpush1.bf16.msra.mxu0 0
    %56 = vmatprep.subr.bf16.mxu0 0
    %57 = vmatpush1.bf16.msra.mxu0 0
    %58 = vmatprep.subr.bf16.mxu0 0
    %59 = vmatpush1.bf16.msra.mxu0 0
    %60 = vmatprep.subr.bf16.mxu0 0
    %61 = vmatpush1.bf16.msra.mxu0 0
    %62 = vmatprep.subr.bf16.mxu0 0
    %63 = vmatpush1.bf16.msra.mxu0 0
    %64 = vmatprep.subr.bf16.mxu0 0
    %65 = vmatpush1.bf16.msra.mxu0 0
    %66 = vmatprep.subr.bf16.mxu0 0
    %67 = vmatpush1.bf16.msra.mxu0 0
    %68 = vmatprep.subr.bf16.mxu0 0
    %69 = vmatpush1.bf16.msra.mxu0 0
    %70 = vmatprep.subr.bf16.mxu0 0
    %71 = vmatpush1.bf16.msra.mxu0 0
    %72 = vmatprep.subr.bf16.mxu0 0
    %73 = vmatpush1.bf16.msra.mxu0 0
    %74 = vmatprep.subr.bf16.mxu0 0
    %75 = vmatpush1.bf16.msra.mxu0 0
    %76 = vmatprep.subr.bf16.mxu0 0
    %77 = vmatpush1.bf16.msra.mxu0 0
    %78 = vmatprep.mubr.bf16.mxu0 0
    %79 = vmatmul.mubr.bf16.gmra.mrb[0].mxu0 %v40
    %v80 = vpop.f32.mrb[0].mxu0
    %v81 = vadd.f32 %v36, %v80
    %v82 = vpop.f32.mrb[0].mxu0
    %v83 = vpop.f32.mrb[0].mxu0
    %v84 = vpop.f32.mrb[0].mxu0
    %85 = vdwg.mxu0
    %v86 = vmax.f32 %v81, 0.0
    %v87 = vpack.c.bf16 %v86, %v86
    %s88 = scalar_lea.vmem [#allocation2], 64
    %v89 = vld [vmem:[%s88] sm:$0xf]
    %v90 = vld [vmem:[%s88 + $0x4] sm:$0xf]
    %v91 = vld [vmem:[%s88 + $0x8] sm:$0xf]
    %v92 = vld [vmem:[%s88 + $0xc] sm:$0xf]
    %v93 = vld [vmem:[%s88 + $0x10] sm:$0xf]
    %v94 = vld [vmem:[%s88 + $0x14] sm:$0xf]
    %v95 = vld [vmem:[%s88 + $0x18] sm:$0xf]
    %v96 = vld [vmem:[%s88 + $0x1c] sm:$0xf]
    %v97 = vld [vmem:[%s88 + $0x20] sm:$0xf]
    %v98 = vld [vmem:[%s88 + $0x24] sm:$0xf]
    %v99 = vld [vmem:[%s88 + $0x28] sm:$0xf]
    %v100 = vld [vmem:[%s88 + $0x2c] sm:$0xf]
    %v101 = vld [vmem:[%s88 + $0x30] sm:$0xf]
    %v102 = vld [vmem:[%s88 + $0x34] sm:$0xf]
    %v103 = vld [vmem:[%s88 + $0x38] sm:$0xf]
    %v104 = vld [vmem:[%s88 + $0x3c] sm:$0xf]
    %s105 = scalar_lea.vmem %s2, 1
    %v106 = vld [vmem:[%s105] sm:$0x1]
    %v108 = vlaneseq
    %v109 = vshrl.u32 %v108, 7
    %v110 = vsub.s32 0, %v109
    %v111 = vrot.slane %v106, %v110
    %v129 = vunpack.c.l.b16 %v89
    %v130 = vunpack.c.l.b16 %v90
    %v131 = vunpack.c.l.b16 %v91
    %v132 = vunpack.c.l.b16 %v92
    %v133 = vunpack.c.l.b16 %v93
    %v134 = vunpack.c.l.b16 %v94
    %v135 = vunpack.c.l.b16 %v95
    %v136 = vunpack.c.l.b16 %v96
    %v137 = vunpack.c.l.b16 %v97
    %v138 = vunpack.c.l.b16 %v98
    %v139 = vunpack.c.l.b16 %v99
    %v140 = vunpack.c.l.b16 %v100
    %v141 = vunpack.c.l.b16 %v101
    %v142 = vunpack.c.l.b16 %v102
    %v143 = vunpack.c.l.b16 %v103
    %v144 = vunpack.c.l.b16 %v104
    %v145 = vpack.c.b16 %v130, %v129
    %v146 = vpack.c.b16 %v132, %v131
    %v147 = vpack.c.b16 %v134, %v133
    %v148 = vpack.c.b16 %v136, %v135
    %v149 = vpack.c.b16 %v138, %v137
    %v150 = vpack.c.b16 %v140, %v139
    %v151 = vpack.c.b16 %v142, %v141
    %v152 = vpack.c.b16 %v144, %v143
    %161 = vmatprep.subr.bf16.mxu0 0
    %162 = vmatpush1.bf16.msra.mxu0 %v145
    %163 = vmatprep.subr.bf16.mxu0 0
    %164 = vmatpush1.bf16.msra.mxu0 %v146
    %165 = vmatprep.subr.bf16.mxu0 0
    %166 = vmatpush1.bf16.msra.mxu0 %v147
    %167 = vmatprep.subr.bf16.mxu0 0
    %168 = vmatpush1.bf16.msra.mxu0 %v148
    %169 = vmatprep.subr.bf16.mxu0 0
    %170 = vmatpush1.bf16.msra.mxu0 %v149
    %171 = vmatprep.subr.bf16.mxu0 0
    %172 = vmatpush1.bf16.msra.mxu0 %v150
    %173 = vmatprep.subr.bf16.mxu0 0
    %174 = vmatpush1.bf16.msra.mxu0 %v151
    %175 = vmatprep.subr.bf16.mxu0 0
    %176 = vmatpush1.bf16.msra.mxu0 %v152
    %177 = vmatprep.subr.bf16.mxu0 0
    %178 = vmatpush1.bf16.msra.mxu0 0
    %179 = vmatprep.subr.bf16.mxu0 0
    %180 = vmatpush1.bf16.msra.mxu0 0
    %181 = vmatprep.subr.bf16.mxu0 0
    %182 = vmatpush1.bf16.msra.mxu0 0
    %183 = vmatprep.subr.bf16.mxu0 0
    %184 = vmatpush1.bf16.msra.mxu0 0
    %185 = vmatprep.subr.bf16.mxu0 0
    %186 = vmatpush1.bf16.msra.mxu0 0
    %187 = vmatprep.subr.bf16.mxu0 0
    %188 = vmatpush1.bf16.msra.mxu0 0
    %189 = vmatprep.subr.bf16.mxu0 0
    %190 = vmatpush1.bf16.msra.mxu0 0
    %191 = vmatprep.subr.bf16.mxu0 0
    %192 = vmatpush1.bf16.msra.mxu0 0
    %193 = vmatprep.mubr.bf16.mxu0 0
    %194 = vmatmul.mubr.bf16.gmra.mrb[0].mxu0 %v87
    %v195 = vpop.f32.mrb[0].mxu0
    %v196 = vadd.f32 %v111, %v195
    %v197 = vpop.f32.mrb[0].mxu0
    %v198 = vpop.f32.mrb[0].mxu0
    %v199 = vpop.f32.mrb[0].mxu0
    %200 = vdwg.mxu0
    %v201 = vmax.f32 %v196, 0.0
    %v202 = vpack.c.bf16 %v201, %v201
    %s203 = scalar_lea.vmem [#allocation2], 128
    %v204 = vld [vmem:[%s203] sm:$0xf]
    %v205 = vld [vmem:[%s203 + $0x4] sm:$0xf]
    %v206 = vld [vmem:[%s203 + $0x8] sm:$0xf]
    %v207 = vld [vmem:[%s203 + $0xc] sm:$0xf]
    %v208 = vld [vmem:[%s203 + $0x10] sm:$0xf]
    %v209 = vld [vmem:[%s203 + $0x14] sm:$0xf]
    %v210 = vld [vmem:[%s203 + $0x18] sm:$0xf]
    %v211 = vld [vmem:[%s203 + $0x1c] sm:$0xf]
    %v212 = vld [vmem:[%s203 + $0x20] sm:$0xf]
    %v213 = vld [vmem:[%s203 + $0x24] sm:$0xf]
    %v214 = vld [vmem:[%s203 + $0x28] sm:$0xf]
    %v215 = vld [vmem:[%s203 + $0x2c] sm:$0xf]
    %v216 = vld [vmem:[%s203 + $0x30] sm:$0xf]
    %v217 = vld [vmem:[%s203 + $0x34] sm:$0xf]
    %v218 = vld [vmem:[%s203 + $0x38] sm:$0xf]
    %v219 = vld [vmem:[%s203 + $0x3c] sm:$0xf]
    %s220 = scalar_lea.vmem %s2, 2
    %v221 = vld [vmem:[%s220] sm:$0x1]
    %v223 = vlaneseq
    %v224 = vshrl.u32 %v223, 7
    %v225 = vsub.s32 0, %v224
    %v226 = vrot.slane %v221, %v225
    %v244 = vunpack.c.l.b16 %v204
    %v245 = vunpack.c.l.b16 %v205
    %v246 = vunpack.c.l.b16 %v206
    %v247 = vunpack.c.l.b16 %v207
    %v248 = vunpack.c.l.b16 %v208
    %v249 = vunpack.c.l.b16 %v209
    %v250 = vunpack.c.l.b16 %v210
    %v251 = vunpack.c.l.b16 %v211
    %v252 = vunpack.c.l.b16 %v212
    %v253 = vunpack.c.l.b16 %v213
    %v254 = vunpack.c.l.b16 %v214
    %v255 = vunpack.c.l.b16 %v215
    %v256 = vunpack.c.l.b16 %v216
    %v257 = vunpack.c.l.b16 %v217
    %v258 = vunpack.c.l.b16 %v218
    %v259 = vunpack.c.l.b16 %v219
    %v260 = vpack.c.b16 %v245, %v244
    %v261 = vpack.c.b16 %v247, %v246
    %v262 = vpack.c.b16 %v249, %v248
    %v263 = vpack.c.b16 %v251, %v250
    %v264 = vpack.c.b16 %v253, %v252
    %v265 = vpack.c.b16 %v255, %v254
    %v266 = vpack.c.b16 %v257, %v256
    %v267 = vpack.c.b16 %v259, %v258
    %276 = vmatprep.subr.bf16.mxu0 0
    %277 = vmatpush1.bf16.msra.mxu0 %v260
    %278 = vmatprep.subr.bf16.mxu0 0
    %279 = vmatpush1.bf16.msra.mxu0 %v261
    %280 = vmatprep.subr.bf16.mxu0 0
    %281 = vmatpush1.bf16.msra.mxu0 %v262
    %282 = vmatprep.subr.bf16.mxu0 0
    %283 = vmatpush1.bf16.msra.mxu0 %v263
    %284 = vmatprep.subr.bf16.mxu0 0
    %285 = vmatpush1.bf16.msra.mxu0 %v264
    %286 = vmatprep.subr.bf16.mxu0 0
    %287 = vmatpush1.bf16.msra.mxu0 %v265
    %288 = vmatprep.subr.bf16.mxu0 0
    %289 = vmatpush1.bf16.msra.mxu0 %v266
    %290 = vmatprep.subr.bf16.mxu0 0
    %291 = vmatpush1.bf16.msra.mxu0 %v267
    %292 = vmatprep.subr.bf16.mxu0 0
    %293 = vmatpush1.bf16.msra.mxu0 0
    %294 = vmatprep.subr.bf16.mxu0 0
    %295 = vmatpush1.bf16.msra.mxu0 0
    %296 = vmatprep.subr.bf16.mxu0 0
    %297 = vmatpush1.bf16.msra.mxu0 0
    %298 = vmatprep.subr.bf16.mxu0 0
    %299 = vmatpush1.bf16.msra.mxu0 0
    %300 = vmatprep.subr.bf16.mxu0 0
    %301 = vmatpush1.bf16.msra.mxu0 0
    %302 = vmatprep.subr.bf16.mxu0 0
    %303 = vmatpush1.bf16.msra.mxu0 0
    %304 = vmatprep.subr.bf16.mxu0 0
    %305 = vmatpush1.bf16.msra.mxu0 0
    %306 = vmatprep.subr.bf16.mxu0 0
    %307 = vmatpush1.bf16.msra.mxu0 0
    %308 = vmatprep.mubr.bf16.mxu0 0
    %309 = vmatmul.mubr.bf16.gmra.mrb[0].mxu0 %v202
    %v310 = vpop.f32.mrb[0].mxu0
    %v311 = vadd.f32 %v226, %v310
    %v312 = vpop.f32.mrb[0].mxu0
    %v313 = vpop.f32.mrb[0].mxu0
    %v314 = vpop.f32.mrb[0].mxu0
    %315 = vdwg.mxu0
    %v316 = vmax.f32 %v311, 0.0
    %v317 = vpack.c.bf16 %v316, %v316
    %s318 = scalar_lea.vmem [#allocation2], 192
    %v319 = vld [vmem:[%s318] sm:$0xf]
    %v320 = vld [vmem:[%s318 + $0x4] sm:$0xf]
    %v321 = vld [vmem:[%s318 + $0x8] sm:$0xf]
    %v322 = vld [vmem:[%s318 + $0xc] sm:$0xf]
    %v323 = vld [vmem:[%s318 + $0x10] sm:$0xf]
    %v324 = vld [vmem:[%s318 + $0x14] sm:$0xf]
    %v325 = vld [vmem:[%s318 + $0x18] sm:$0xf]
    %v326 = vld [vmem:[%s318 + $0x1c] sm:$0xf]
    %v327 = vld [vmem:[%s318 + $0x20] sm:$0xf]
    %v328 = vld [vmem:[%s318 + $0x24] sm:$0xf]
    %v329 = vld [vmem:[%s318 + $0x28] sm:$0xf]
    %v330 = vld [vmem:[%s318 + $0x2c] sm:$0xf]
    %v331 = vld [vmem:[%s318 + $0x30] sm:$0xf]
    %v332 = vld [vmem:[%s318 + $0x34] sm:$0xf]
    %v333 = vld [vmem:[%s318 + $0x38] sm:$0xf]
    %v334 = vld [vmem:[%s318 + $0x3c] sm:$0xf]
    %s335 = scalar_lea.vmem %s2, 3
    %v336 = vld [vmem:[%s335] sm:$0x1]
    %v338 = vlaneseq
    %v339 = vshrl.u32 %v338, 7
    %v340 = vsub.s32 0, %v339
    %v341 = vrot.slane %v336, %v340
    %v359 = vunpack.c.l.b16 %v319
    %v360 = vunpack.c.l.b16 %v320
    %v361 = vunpack.c.l.b16 %v321
    %v362 = vunpack.c.l.b16 %v322
    %v363 = vunpack.c.l.b16 %v323
    %v364 = vunpack.c.l.b16 %v324
    %v365 = vunpack.c.l.b16 %v325
    %v366 = vunpack.c.l.b16 %v326
    %v367 = vunpack.c.l.b16 %v327
    %v368 = vunpack.c.l.b16 %v328
    %v369 = vunpack.c.l.b16 %v329
    %v370 = vunpack.c.l.b16 %v330
    %v371 = vunpack.c.l.b16 %v331
    %v372 = vunpack.c.l.b16 %v332
    %v373 = vunpack.c.l.b16 %v333
    %v374 = vunpack.c.l.b16 %v334
    %v375 = vpack.c.b16 %v360, %v359
    %v376 = vpack.c.b16 %v362, %v361
    %v377 = vpack.c.b16 %v364, %v363
    %v378 = vpack.c.b16 %v366, %v365
    %v379 = vpack.c.b16 %v368, %v367
    %v380 = vpack.c.b16 %v370, %v369
    %v381 = vpack.c.b16 %v372, %v371
    %v382 = vpack.c.b16 %v374, %v373
    %391 = vmatprep.subr.bf16.mxu0 0
    %392 = vmatpush1.bf16.msra.mxu0 %v375
    %393 = vmatprep.subr.bf16.mxu0 0
    %394 = vmatpush1.bf16.msra.mxu0 %v376
    %395 = vmatprep.subr.bf16.mxu0 0
    %396 = vmatpush1.bf16.msra.mxu0 %v377
    %397 = vmatprep.subr.bf16.mxu0 0
    %398 = vmatpush1.bf16.msra.mxu0 %v378
    %399 = vmatprep.subr.bf16.mxu0 0
    %400 = vmatpush1.bf16.msra.mxu0 %v379
    %401 = vmatprep.subr.bf16.mxu0 0
    %402 = vmatpush1.bf16.msra.mxu0 %v380
    %403 = vmatprep.subr.bf16.mxu0 0
    %404 = vmatpush1.bf16.msra.mxu0 %v381
    %405 = vmatprep.subr.bf16.mxu0 0
    %406 = vmatpush1.bf16.msra.mxu0 %v382
    %407 = vmatprep.subr.bf16.mxu0 0
    %408 = vmatpush1.bf16.msra.mxu0 0
    %409 = vmatprep.subr.bf16.mxu0 0
    %410 = vmatpush1.bf16.msra.mxu0 0
    %411 = vmatprep.subr.bf16.mxu0 0
    %412 = vmatpush1.bf16.msra.mxu0 0
    %413 = vmatprep.subr.bf16.mxu0 0
    %414 = vmatpush1.bf16.msra.mxu0 0
    %415 = vmatprep.subr.bf16.mxu0 0
    %416 = vmatpush1.bf16.msra.mxu0 0
    %417 = vmatprep.subr.bf16.mxu0 0
    %418 = vmatpush1.bf16.msra.mxu0 0
    %419 = vmatprep.subr.bf16.mxu0 0
    %420 = vmatpush1.bf16.msra.mxu0 0
    %421 = vmatprep.subr.bf16.mxu0 0
    %422 = vmatpush1.bf16.msra.mxu0 0
    %423 = vmatprep.mubr.bf16.mxu0 0
    %424 = vmatmul.mubr.bf16.gmra.mrb[0].mxu0 %v317
    %v425 = vpop.f32.mrb[0].mxu0
    %v426 = vadd.f32 %v341, %v425
    %v427 = vpop.f32.mrb[0].mxu0
    %v428 = vpop.f32.mrb[0].mxu0
    %v429 = vpop.f32.mrb[0].mxu0
    %430 = vdwg.mxu0
    %v431 = vmax.f32 %v426, 0.0
    %v432 = vpack.c.bf16 %v431, %v431
    %s433 = scalar_lea.vmem [#allocation2], 256
    %v434 = vld [vmem:[%s433] sm:$0xf]
    %v435 = vld [vmem:[%s433 + $0x4] sm:$0xf]
    %v436 = vld [vmem:[%s433 + $0x8] sm:$0xf]
    %v437 = vld [vmem:[%s433 + $0xc] sm:$0xf]
    %v438 = vld [vmem:[%s433 + $0x10] sm:$0xf]
    %v439 = vld [vmem:[%s433 + $0x14] sm:$0xf]
    %v440 = vld [vmem:[%s433 + $0x18] sm:$0xf]
    %v441 = vld [vmem:[%s433 + $0x1c] sm:$0xf]
    %v442 = vld [vmem:[%s433 + $0x20] sm:$0xf]
    %v443 = vld [vmem:[%s433 + $0x24] sm:$0xf]
    %v444 = vld [vmem:[%s433 + $0x28] sm:$0xf]
    %v445 = vld [vmem:[%s433 + $0x2c] sm:$0xf]
    %v446 = vld [vmem:[%s433 + $0x30] sm:$0xf]
    %v447 = vld [vmem:[%s433 + $0x34] sm:$0xf]
    %v448 = vld [vmem:[%s433 + $0x38] sm:$0xf]
    %v449 = vld [vmem:[%s433 + $0x3c] sm:$0xf]
    %s450 = scalar_lea.vmem %s2, 4
    %v451 = vld [vmem:[%s450] sm:$0x1]
    %v453 = vlaneseq
    %v454 = vshrl.u32 %v453, 7
    %v455 = vsub.s32 0, %v454
    %v456 = vrot.slane %v451, %v455
    %v474 = vunpack.c.l.b16 %v434
    %v475 = vunpack.c.l.b16 %v435
    %v476 = vunpack.c.l.b16 %v436
    %v477 = vunpack.c.l.b16 %v437
    %v478 = vunpack.c.l.b16 %v438
    %v479 = vunpack.c.l.b16 %v439
    %v480 = vunpack.c.l.b16 %v440
    %v481 = vunpack.c.l.b16 %v441
    %v482 = vunpack.c.l.b16 %v442
    %v483 = vunpack.c.l.b16 %v443
    %v484 = vunpack.c.l.b16 %v444
    %v485 = vunpack.c.l.b16 %v445
    %v486 = vunpack.c.l.b16 %v446
    %v487 = vunpack.c.l.b16 %v447
    %v488 = vunpack.c.l.b16 %v448
    %v489 = vunpack.c.l.b16 %v449
    %v490 = vpack.c.b16 %v475, %v474
    %v491 = vpack.c.b16 %v477, %v476
    %v492 = vpack.c.b16 %v479, %v478
    %v493 = vpack.c.b16 %v481, %v480
    %v494 = vpack.c.b16 %v483, %v482
    %v495 = vpack.c.b16 %v485, %v484
    %v496 = vpack.c.b16 %v487, %v486
    %v497 = vpack.c.b16 %v489, %v488
    %506 = vmatprep.subr.bf16.mxu0 0
    %507 = vmatpush1.bf16.msra.mxu0 %v490
    %508 = vmatprep.subr.bf16.mxu0 0
    %509 = vmatpush1.bf16.msra.mxu0 %v491
    %510 = vmatprep.subr.bf16.mxu0 0
    %511 = vmatpush1.bf16.msra.mxu0 %v492
    %512 = vmatprep.subr.bf16.mxu0 0
    %513 = vmatpush1.bf16.msra.mxu0 %v493
    %514 = vmatprep.subr.bf16.mxu0 0
    %515 = vmatpush1.bf16.msra.mxu0 %v494
    %516 = vmatprep.subr.bf16.mxu0 0
    %517 = vmatpush1.bf16.msra.mxu0 %v495
    %518 = vmatprep.subr.bf16.mxu0 0
    %519 = vmatpush1.bf16.msra.mxu0 %v496
    %520 = vmatprep.subr.bf16.mxu0 0
    %521 = vmatpush1.bf16.msra.mxu0 %v497
    %522 = vmatprep.subr.bf16.mxu0 0
    %523 = vmatpush1.bf16.msra.mxu0 0
    %524 = vmatprep.subr.bf16.mxu0 0
    %525 = vmatpush1.bf16.msra.mxu0 0
    %526 = vmatprep.subr.bf16.mxu0 0
    %527 = vmatpush1.bf16.msra.mxu0 0
    %528 = vmatprep.subr.bf16.mxu0 0
    %529 = vmatpush1.bf16.msra.mxu0 0
    %530 = vmatprep.subr.bf16.mxu0 0
    %531 = vmatpush1.bf16.msra.mxu0 0
    %532 = vmatprep.subr.bf16.mxu0 0
    %533 = vmatpush1.bf16.msra.mxu0 0
    %534 = vmatprep.subr.bf16.mxu0 0
    %535 = vmatpush1.bf16.msra.mxu0 0
    %536 = vmatprep.subr.bf16.mxu0 0
    %537 = vmatpush1.bf16.msra.mxu0 0
    %538 = vmatprep.mubr.bf16.mxu0 0
    %539 = vmatmul.mubr.bf16.gmra.mrb[0].mxu0 %v432
    %v540 = vpop.f32.mrb[0].mxu0
    %v541 = vadd.f32 %v456, %v540
    %v542 = vpop.f32.mrb[0].mxu0
    %v543 = vpop.f32.mrb[0].mxu0
    %v544 = vpop.f32.mrb[0].mxu0
    %545 = vdwg.mxu0
    %v546 = vpack.c.bf16 %v541, %v541
    %547 = vst [vmem:[%s3] sm:$0xf] %v546
    // Predicated region
    $region18: #{qnetwork_forward.1} parent=1 // pred_check
      _
    $region19: #{qnetwork_forward.1} parent=1 // pred_check_branch
      %549 = sbr.rel (0) target = $region21
    $region20: #{qnetwork_forward.1} parent=1 // pred_region
      _
    $region21: #{qnetwork_forward.1} parent=1 // pred_fallthru
      _
    // Predicated region
    $region22: #{qnetwork_forward.1} parent=1 // pred_check
      _
    $region23: #{qnetwork_forward.1} parent=1 // pred_check_branch
      %551 = sbr.rel (0) target = $region25
    $region24: #{qnetwork_forward.1} parent=1 // pred_region
      _
    $region25: #{qnetwork_forward.1} parent=1 // pred_fallthru
      _
    %552 = vsyncpa [#allocation3], 1

</llo_original>
